<compile_context>
chip_gen: v5e
topology: v5e:2x2
jax: 0.10.0
libtpu: 0.0.40
codegen_flags: <defaults>
</compile_context>

<pallas_src>
import jax
import jax.numpy as jnp
from jax.experimental import pallas as pl
from jax.experimental.pallas import tpu as pltpu


EPS = 1e-5


# ----------------------------- in-kernel helpers ------------------------------

def _prelu(x, a):
    # a broadcasts ((1,1) tile or scalar) over the whole tile.
    return jnp.where(x >= 0, x, a * x)


def _cln(x, g, b):
    # channel-wise LayerNorm over the lane (channel) axis, single-pass stats,
    # variance clamped to avoid negative values from cancellation.
    mean = jnp.mean(x, axis=-1, keepdims=True)
    msq = jnp.mean(x * x, axis=-1, keepdims=True)
    var = jnp.maximum(msq - mean * mean, 0.0)
    return (x - mean) * jax.lax.rsqrt(var + EPS) * g + b


def _choose_tt(T, target=512):
    """Largest multiple of 8 <= target that divides T (fallback: whole T)."""
    if T % 8 != 0:
        # TODO(synk): pad/mask ragged T instead of the whole-T fallback.
        return T
    tt = min(T, target)
    tt -= tt % 8
    tt = max(tt, 8)
    while T % tt != 0:
        tt -= 8
    return max(tt, 8)


def _round_up(v, m):
    return (v + m - 1) // m * m


# ----------------------------- Pallas kernels ------------------------------

def frontend_kernel(x_ref, g_ref, b_ref, w_ref, pb_ref, o_ref):
    """cLN on the encoder output fused with the (zero-padded) 1x1 proj conv.

    Output width is B + S: the skip lanes come out exactly zero because the
    proj weight/bias are zero-padded there, so the chain kernel's initial
    combined [residual | skip] state is produced directly."""
    xn = _cln(x_ref[...], g_ref[...], b_ref[...])
    o_ref[...] = (jnp.dot(xn, w_ref[...], preferred_element_type=jnp.float32)
                  + pb_ref[...]).astype(o_ref.dtype)


def make_chain_kernel(*, P, X, T, Bc, H, PAD0, n_blocks):
    """One kernel for the whole chain of Conv1DBlocks.

    Grid = (batch, block); the combined (T, B+S) [residual | skip] state lives
    in VMEM scratch for the whole block loop of a batch element."""

    def kernel(x_ref, slopes_ref, w1_ref, vecs_ref, dw_ref, wsk_ref, bsk_ref,
               out_ref, state_ref, ypad_ref):
        j = pl.program_id(1)

        @pl.when(j == 0)
        def _init():
            # load the frontend output (skip lanes already zero) and zero the
            # dconv halo regions once per batch element (they are never
            # written elsewhere, so they stay zero for every block).
            state_ref[...] = x_ref[...]
            ypad_ref[0:PAD0, :] = jnp.zeros((PAD0, H), jnp.float32)
            ypad_ref[PAD0 + T:PAD0 + T + PAD0, :] = jnp.zeros((PAD0, H),
                                                              jnp.float32)

        # dilation schedule of the module: 2**x for x in range(X), repeated R
        # times -> purely a function of the block index (scalar int ops only).
        d = jnp.left_shift(1, j % X)                 # int32 scalar
        pad = (d * (P - 1)) // 2

        a1 = slopes_ref[:, 0:1]                      # (1,1) PReLU slopes
        a2 = slopes_ref[:, 1:2]
        vecs = vecs_ref[...]                         # (6, H): b1,g1,be1,db,g2,be2
        b1, g1, be1 = vecs[0:1, :], vecs[1:2, :], vecs[2:3, :]
        db, g2, be2 = vecs[3:4, :], vecs[4:5, :], vecs[5:6, :]

        cur = state_ref[...]                         # (T, B+S) resident state
        res = cur[:, 0:Bc]                           # residual stream (prefix lanes)

        # --- conv1x1 (B -> H): one (T,B)@(B,H) MXU matmul ---
        y = jnp.dot(res, w1_ref[...], preferred_element_type=jnp.float32) + b1
        y = _cln(_prelu(y, a1), g1, be1)

        # --- depthwise dilated conv, "same" padding via the halo scratch ---
        ypad_ref[PAD0:PAD0 + T, :] = y               # static, 8-aligned offset
        dw = dw_ref[...]                             # (P, H) depthwise taps
        acc = jnp.zeros((T, H), jnp.float32)
        for k in range(P):
            start = PAD0 - pad + k * d               # dynamic (dilation-dependent)
            acc = acc + ypad_ref[pl.ds(start, T), :] * dw[k:k + 1, :]
        y = _cln(_prelu(acc + db, a2), g2, be2)

        # --- fused sconv + skip_conv: single (T,H)@(H,B+S) matmul ---
        rs = jnp.dot(y, wsk_ref[...], preferred_element_type=jnp.float32) \
            + bsk_ref[...]

        # --- residual add AND skip accumulation = one lane-dense add ---
        new = cur + rs
        state_ref[...] = new

        @pl.when(j == n_blocks - 1)
        def _finalize():
            out_ref[...] = new.astype(out_ref.dtype)

    return kernel


def make_mask_kernel(num_spks, N):
    """Mask head: PReLU -> 1x1 conv (zero rows on residual lanes) -> relu ->
    per-speaker x * mask written with static lane slices (no concat copy)."""
    def kernel(sk_ref, x_ref, a_ref, w_ref, b_ref, o_ref):
        a = a_ref[...]                               # (1,1)
        m = jnp.dot(_prelu(sk_ref[...], a), w_ref[...],
                    preferred_element_type=jnp.float32) + b_ref[...]
        m = jnp.maximum(m, 0.0)                      # relu non-linearity
        xx = x_ref[...]                              # (tT, N)
        for s in range(num_spks):
            o_ref[:, s * N:(s + 1) * N] = (xx * m[:, s * N:(s + 1) * N]
                                           ).astype(o_ref.dtype)
    return kernel


# ----------------------------- kernel wrappers ------------------------------

def frontend(x, ln_g, ln_b, proj_w_pad, proj_b_pad):
    n, T, N = x.shape
    CS = proj_w_pad.shape[1]
    tT = _choose_tt(T)
    return pl.pallas_call(
        frontend_kernel,
        out_shape=jax.ShapeDtypeStruct((n, T, CS), jnp.float32),
        grid=(n, T // tT),
        in_specs=[
            pl.BlockSpec((None, tT, N), lambda b, t: (b, t, 0)),
            pl.BlockSpec((1, N), lambda b, t: (0, 0)),
            pl.BlockSpec((1, N), lambda b, t: (0, 0)),
            pl.BlockSpec((N, CS), lambda b, t: (0, 0)),
            pl.BlockSpec((1, CS), lambda b, t: (0, 0)),
        ],
        out_specs=pl.BlockSpec((None, tT, CS), lambda b, t: (b, t, 0)),
        compiler_params=pltpu.CompilerParams(
            dimension_semantics=("parallel", "parallel")),
    )(x, ln_g.reshape(1, N), ln_b.reshape(1, N),
      proj_w_pad, proj_b_pad.reshape(1, CS))


def chain_blocks(x0, stacked, *, P, X):
    """Run all R*X Conv1DBlocks in a single pallas_call (state stays in VMEM)."""
    n, T, CS = x0.shape
    nb, Bc, H = stacked["w1"].shape
    max_pad = (2 ** (X - 1)) * (P - 1) // 2
    PAD0 = max(_round_up(max_pad, 8), 8)             # static, 8-aligned halo

    wmap = lambda b, j: (j, 0, 0)                    # per-block weight fetch
    return pl.pallas_call(
        make_chain_kernel(P=P, X=X, T=T, Bc=Bc, H=H, PAD0=PAD0, n_blocks=nb),
        out_shape=jax.ShapeDtypeStruct((n, T, CS), jnp.float32),
        grid=(n, nb),
        in_specs=[
            pl.BlockSpec((None, T, CS), lambda b, j: (b, 0, 0)),  # initial state
            pl.BlockSpec((None, 1, 2), wmap),                     # PReLU slopes
            pl.BlockSpec((None, Bc, H), wmap),                    # conv1x1 weight
            pl.BlockSpec((None, 6, H), wmap),                     # b1,g1,be1,db,g2,be2
            pl.BlockSpec((None, P, H), wmap),                     # depthwise taps
            pl.BlockSpec((None, H, CS), wmap),                    # fused sconv|skip W
            pl.BlockSpec((None, 1, CS), wmap),                    # fused sconv|skip b
        ],
        out_specs=pl.BlockSpec((None, T, CS), lambda b, j: (b, 0, 0)),
        scratch_shapes=[
            pltpu.VMEM((T, CS), jnp.float32),              # resident [res|skip]
            pltpu.VMEM((T + 2 * PAD0, H), jnp.float32),    # dconv halo scratch
        ],
        compiler_params=pltpu.CompilerParams(
            dimension_semantics=("parallel", "arbitrary"),
            vmem_limit_bytes=64 * 1024 * 1024),
    )(x0, stacked["slopes"], stacked["w1"], stacked["vecs"], stacked["dw"],
      stacked["wsk"], stacked["bsk"])


def mask_head(combined, x, a, w_pad, b, num_spks):
    n, T, CS = combined.shape
    N = x.shape[2]
    C = w_pad.shape[1]                               # num_spks * N
    tT = _choose_tt(T)
    return pl.pallas_call(
        make_mask_kernel(num_spks, N),
        out_shape=jax.ShapeDtypeStruct((n, T, C), jnp.float32),
        grid=(n, T // tT),
        in_specs=[
            pl.BlockSpec((None, tT, CS), lambda bb, t: (bb, t, 0)),
            pl.BlockSpec((None, tT, N), lambda bb, t: (bb, t, 0)),
            pl.BlockSpec((1, 1), lambda bb, t: (0, 0)),
            pl.BlockSpec((CS, C), lambda bb, t: (0, 0)),
            pl.BlockSpec((1, C), lambda bb, t: (0, 0)),
        ],
        out_specs=pl.BlockSpec((None, tT, C), lambda bb, t: (bb, t, 0)),
        compiler_params=pltpu.CompilerParams(
            dimension_semantics=("parallel", "parallel")),
    )(combined, x, jnp.asarray(a, jnp.float32).reshape(1, 1), w_pad,
      b.reshape(1, C))


# ----------------------------- one-time parameter prep ------------------------------

def prep_params(params, *, num_spks):
    """Stack per-block weights (leading block axis), fuse sconv|skip weights,
    and zero-pad the frontend / mask weights for the combined [res|skip] layout.
    Runs once, outside the per-forward path."""
    blocks = params["blocks"]
    Bc, H = blocks[0]["w1"].shape
    S = blocks[0]["kw"].shape[1]
    N = params["proj_w"].shape[0]
    C = params["mask_w"].shape[1]

    w1 = jnp.stack([b["w1"] for b in blocks])                          # (nb,B,H)
    vecs = jnp.stack([jnp.stack([b["b1"], b["ln1_g"], b["ln1_b"],
                                 b["db"], b["ln2_g"], b["ln2_b"]])
                      for b in blocks])                                # (nb,6,H)
    dw = jnp.stack([b["dw"] for b in blocks])                          # (nb,P,H)
    wsk = jnp.stack([jnp.concatenate([b["sw"], b["kw"]], axis=1)
                     for b in blocks])                                 # (nb,H,B+S)
    bsk = jnp.stack([jnp.concatenate([b["sb"], b["kb"]])[None, :]
                     for b in blocks])                                 # (nb,1,B+S)
    slopes = jnp.stack([jnp.stack([jnp.float32(b["a1"]),
                                   jnp.float32(b["a2"])])[None, :]
                        for b in blocks])                              # (nb,1,2)

    proj_w_pad = jnp.concatenate(
        [params["proj_w"], jnp.zeros((N, S), jnp.float32)], axis=1)    # (N,B+S)
    proj_b_pad = jnp.concatenate(
        [params["proj_b"], jnp.zeros((S,), jnp.float32)])              # (B+S,)
    mask_w_pad = jnp.concatenate(
        [jnp.zeros((Bc, C), jnp.float32), params["mask_w"]], axis=0)   # (B+S,C)

    return {
        "ln_g": params["ln_g"], "ln_b": params["ln_b"],
        "proj_w": proj_w_pad, "proj_b": proj_b_pad,
        "mask_a": jnp.asarray(params["mask_a"], jnp.float32),
        "mask_w": mask_w_pad, "mask_b": params["mask_b"],
        "stacked": {"w1": w1, "vecs": vecs, "dw": dw, "wsk": wsk,
                    "bsk": bsk, "slopes": slopes},
    }


# ----------------------------- TCN forward ------------------------------

def tcn_forward(x_nct, prepped, *, P, X, num_spks):
    """x_nct: (n, N, T) like PyTorch.  Returns num_spks arrays of (n, N, T)."""
    x = jnp.transpose(x_nct, (0, 2, 1))                       # (n, T, N)
    x0 = frontend(x, prepped["ln_g"], prepped["ln_b"],
                  prepped["proj_w"], prepped["proj_b"])       # (n, T, B+S)
    comb = chain_blocks(x0, prepped["stacked"], P=P, X=X)     # (n, T, B+S)
    masked = mask_head(comb, x, prepped["mask_a"],
                       prepped["mask_w"], prepped["mask_b"], num_spks)
    chunks = jnp.split(masked, num_spks, axis=-1)             # chunk along channels
    return [jnp.transpose(c, (0, 2, 1)) for c in chunks]      # back to (n, N, T)


# ----------------------------- reference (pure jnp) ------------------------------

def ref_forward(x_nct, params, *, P, num_spks):
    def prelu(x, a): return jnp.where(x >= 0, x, a * x)

    def cln(x, g, b):
        mean = x.mean(-1, keepdims=True)
        var = ((x - mean) ** 2).mean(-1, keepdims=True)
        return (x - mean) / jnp.sqrt(var + 1e-5) * g + b

    def pw(x, w, b): return jnp.einsum("ntc,cd->ntd", x, w) + b

    def dw_conv(x, w, b, dilation):
        pad = dilation * (P - 1) // 2
        xp = jnp.pad(x, ((0, 0), (pad, pad), (0, 0)))
        T = x.shape[1]
        acc = sum(xp[:, k * dilation:k * dilation + T, :] * w[k] for k in range(P))
        return acc + b

    x = jnp.transpose(x_nct, (0, 2, 1))
    y = cln(x, params["ln_g"], params["ln_b"])
    out = pw(y, params["proj_w"], params["proj_b"])
    skip_sum = jnp.zeros_like(out)
    for blk in params["blocks"]:
        y = pw(out, blk["w1"], blk["b1"])
        y = cln(prelu(y, blk["a1"]), blk["ln1_g"], blk["ln1_b"])
        y = dw_conv(y, blk["dw"], blk["db"], blk["dilation"])
        y = cln(prelu(y, blk["a2"]), blk["ln2_g"], blk["ln2_b"])
        skip_sum = skip_sum + pw(y, blk["kw"], blk["kb"])
        out = out + pw(y, blk["sw"], blk["sb"])
    m = pw(prelu(skip_sum, params["mask_a"]), params["mask_w"], params["mask_b"])
    chunks = jnp.split(m, num_spks, axis=-1)
    return [jnp.transpose(x * jnp.maximum(c, 0.0), (0, 2, 1)) for c in chunks]


# ----------------------------- deterministic params ------------------------------

def init_params(key, *, N, B, H, P, R, X, num_spks):
    ks = iter(jax.random.split(key, 512))

    def rnd(shape, scale=0.2):
        return scale * jax.random.normal(next(ks), shape, jnp.float32)

    params = {
        "ln_g": rnd((N,)) + 1.0,
        "ln_b": rnd((N,)),
        "proj_w": rnd((N, B)),
        "proj_b": rnd((B,)),
        "mask_a": jnp.float32(0.25),          # nn.PReLU() default init
        "mask_w": rnd((B, num_spks * N)),     # S == B (module defaults 128/128)
        "mask_b": rnd((num_spks * N,)),
        "blocks": [],
    }
    for _ in range(R):
        for xdx in range(X):
            params["blocks"].append({
                "dilation": 2 ** xdx,
                "w1": rnd((B, H)), "b1": rnd((H,)),
                "a1": jnp.float32(0.25),
                "ln1_g": rnd((H,)) + 1.0, "ln1_b": rnd((H,)),
                "dw": rnd((P, H)), "db": rnd((H,)),          # depthwise taps
                "a2": jnp.float32(0.25),
                "ln2_g": rnd((H,)) + 1.0, "ln2_b": rnd((H,)),
                "sw": rnd((H, B)), "sb": rnd((B,)),
                "kw": rnd((H, B)), "kb": rnd((B,)),          # skip_conv -> B ch
            })
    return params


if __name__ == "__main__":
    # Small config consistent with the module (skip_conv outputs B channels in
    # the PyTorch module, so S == B as in the defaults 128/128).
    n, N, T = 2, 16, 32
    B, H, S, P, R, X, num_spks = 16, 32, 16, 3, 2, 3, 2   # 6 blocks, dil 1/2/4

    x = jax.random.normal(jax.random.PRNGKey(0), (n, N, T), jnp.float32)
    params = init_params(jax.random.PRNGKey(42), N=N, B=B, H=H, P=P, R=R, X=X,
                         num_spks=num_spks)
    prepped = prep_params(params, num_spks=num_spks)      # one-time weight prep

    outs = tcn_forward(x, prepped, P=P, X=X, num_spks=num_spks)
    outs = [jax.block_until_ready(o) for o in outs]

    refs = ref_forward(x, params, P=P, num_spks=num_spks)
    for o, r in zip(outs, refs):
        assert o.shape == (n, N, T)
        assert jnp.allclose(o, r, rtol=2e-3, atol=2e-3), float(jnp.max(jnp.abs(o - r)))

    print("KERNEL_OK")
</pallas_src>

<mosaic_0001>
module attributes {stable_mosaic.version = 11 : i64} {
  func.func @frontend_kernel(%arg0: i32, %arg1: i32, %arg2: memref<1x32x16xf32, #tpu.memory_space<vmem>>, %arg3: memref<1x16xf32, #tpu.memory_space<vmem>>, %arg4: memref<1x16xf32, #tpu.memory_space<vmem>>, %arg5: memref<16x32xf32, #tpu.memory_space<vmem>>, %arg6: memref<1x32xf32, #tpu.memory_space<vmem>>, %arg7: memref<1x32x32xf32, #tpu.memory_space<vmem>>) attributes {dimension_semantics = [#tpu.dimension_semantics<parallel>, #tpu.dimension_semantics<parallel>], iteration_bounds = array<i64: 2, 1>, scalar_prefetch = 0 : i64, scratch_operands = 0 : i64, tpu.core_type = #tpu.core_type<tc>, window_params = [{transform_indices = @transform_0, window_bounds = array<i64: 1, 32, 16>}, {pipeline_mode = #tpu.pipeline_mode<synchronous>, transform_indices = @transform_1, window_bounds = array<i64: 1, 16>}, {pipeline_mode = #tpu.pipeline_mode<synchronous>, transform_indices = @transform_2, window_bounds = array<i64: 1, 16>}, {pipeline_mode = #tpu.pipeline_mode<synchronous>, transform_indices = @transform_3, window_bounds = array<i64: 16, 32>}, {pipeline_mode = #tpu.pipeline_mode<synchronous>, transform_indices = @transform_4, window_bounds = array<i64: 1, 32>}, {transform_indices = @transform_5, window_bounds = array<i64: 1, 32, 32>}]} {
    %c0 = arith.constant 0 : index
    %c0_0 = arith.constant 0 : index
    %c0_1 = arith.constant 0 : index
    %0 = vector.load %arg2[%c0, %c0_0, %c0_1] : memref<1x32x16xf32, #tpu.memory_space<vmem>>, vector<1x32x16xf32>
    %1 = vector.shape_cast %0 : vector<1x32x16xf32> to vector<32x16xf32>
    %c0_2 = arith.constant 0 : index
    %c0_3 = arith.constant 0 : index
    %2 = vector.load %arg3[%c0_2, %c0_3] : memref<1x16xf32, #tpu.memory_space<vmem>>, vector<1x16xf32>
    %c0_4 = arith.constant 0 : index
    %c0_5 = arith.constant 0 : index
    %3 = vector.load %arg4[%c0_4, %c0_5] : memref<1x16xf32, #tpu.memory_space<vmem>>, vector<1x16xf32>
    %cst = arith.constant dense<0.000000e+00> : vector<32xf32>
    %4 = vector.multi_reduction <add>, %1, %cst [1] : vector<32x16xf32> to vector<32xf32>
    %5 = vector.shape_cast %4 : vector<32xf32> to vector<32x1xf32>
    %cst_6 = arith.constant 1.600000e+01 : f32
    %6 = vector.broadcast %cst_6 : f32 to vector<32x1xf32>
    %7 = arith.divf %5, %6 : vector<32x1xf32>
    %8 = arith.mulf %1, %1 : vector<32x16xf32>
    %cst_7 = arith.constant dense<0.000000e+00> : vector<32xf32>
    %9 = vector.multi_reduction <add>, %8, %cst_7 [1] : vector<32x16xf32> to vector<32xf32>
    %10 = vector.shape_cast %9 : vector<32xf32> to vector<32x1xf32>
    %cst_8 = arith.constant 1.600000e+01 : f32
    %11 = vector.broadcast %cst_8 : f32 to vector<32x1xf32>
    %12 = arith.divf %10, %11 : vector<32x1xf32>
    %13 = arith.mulf %7, %7 : vector<32x1xf32>
    %14 = arith.subf %12, %13 : vector<32x1xf32>
    %cst_9 = arith.constant 0.000000e+00 : f32
    %15 = vector.broadcast %cst_9 : f32 to vector<32x1xf32>
    %16 = arith.maximumf %14, %15 : vector<32x1xf32>
    %17 = vector.broadcast %7 : vector<32x1xf32> to vector<32x16xf32>
    %18 = arith.subf %1, %17 : vector<32x16xf32>
    %cst_10 = arith.constant 9.99999974E-6 : f32
    %19 = vector.broadcast %cst_10 : f32 to vector<32x1xf32>
    %20 = arith.addf %16, %19 : vector<32x1xf32>
    %21 = math.rsqrt %20 : vector<32x1xf32>
    %22 = vector.broadcast %21 : vector<32x1xf32> to vector<32x16xf32>
    %23 = arith.mulf %18, %22 : vector<32x16xf32>
    %24 = vector.broadcast %2 : vector<1x16xf32> to vector<32x16xf32>
    %25 = arith.mulf %23, %24 : vector<32x16xf32>
    %26 = vector.broadcast %3 : vector<1x16xf32> to vector<32x16xf32>
    %27 = arith.addf %25, %26 : vector<32x16xf32>
    %c0_11 = arith.constant 0 : index
    %c0_12 = arith.constant 0 : index
    %28 = vector.load %arg5[%c0_11, %c0_12] : memref<16x32xf32, #tpu.memory_space<vmem>>, vector<16x32xf32>
    %cst_13 = arith.constant dense<0.000000e+00> : vector<32x32xf32>
    %29 = tpu.matmul %27, %28, %cst_13 {dimension_numbers = #tpu.dot_dimension_numbers<[1], [0], [0], [1], [0, 0, 1, 1], [], []>} : vector<32x16xf32>, vector<16x32xf32>, vector<32x32xf32> -> vector<32x32xf32>
    %c0_14 = arith.constant 0 : index
    %c0_15 = arith.constant 0 : index
    %30 = vector.load %arg6[%c0_14, %c0_15] : memref<1x32xf32, #tpu.memory_space<vmem>>, vector<1x32xf32>
    %31 = vector.broadcast %30 : vector<1x32xf32> to vector<32x32xf32>
    %32 = arith.addf %29, %31 : vector<32x32xf32>
    %c0_16 = arith.constant 0 : index
    %c0_17 = arith.constant 0 : index
    %c0_18 = arith.constant 0 : index
    %33 = vector.load %arg7[%c0_16, %c0_17, %c0_18] : memref<1x32x32xf32, #tpu.memory_space<vmem>>, vector<1x32x32xf32>
    %34 = vector.shape_cast %33 : vector<1x32x32xf32> to vector<32x32xf32>
    %35 = vector.shape_cast %32 : vector<32x32xf32> to vector<1x32x32xf32>
    tpu.vector_store %arg7[%c0_16, %c0_17, %c0_18], %35 {strides = array<i32>} : memref<1x32x32xf32, #tpu.memory_space<vmem>>, vector<1x32x32xf32>,
    return
  }
  func.func @transform_0(%arg0: i32, %arg1: i32) -> (i32, i32, i32) {
    %c0_i32 = arith.constant 0 : i32
    %c0_i32_0 = arith.constant 0 : i32
    return %arg0, %arg1, %c0_i32 : i32, i32, i32
  }
  func.func @transform_1(%arg0: i32, %arg1: i32) -> (i32, i32) {
    %c0_i32 = arith.constant 0 : i32
    %c0_i32_0 = arith.constant 0 : i32
    %c0_i32_1 = arith.constant 0 : i32
    return %c0_i32, %c0_i32_0 : i32, i32
  }
  func.func @transform_2(%arg0: i32, %arg1: i32) -> (i32, i32) {
    %c0_i32 = arith.constant 0 : i32
    %c0_i32_0 = arith.constant 0 : i32
    %c0_i32_1 = arith.constant 0 : i32
    return %c0_i32, %c0_i32_0 : i32, i32
  }
  func.func @transform_3(%arg0: i32, %arg1: i32) -> (i32, i32) {
    %c0_i32 = arith.constant 0 : i32
    %c0_i32_0 = arith.constant 0 : i32
    %c0_i32_1 = arith.constant 0 : i32
    return %c0_i32, %c0_i32_0 : i32, i32
  }
  func.func @transform_4(%arg0: i32, %arg1: i32) -> (i32, i32) {
    %c0_i32 = arith.constant 0 : i32
    %c0_i32_0 = arith.constant 0 : i32
    %c0_i32_1 = arith.constant 0 : i32
    return %c0_i32, %c0_i32_0 : i32, i32
  }
  func.func @transform_5(%arg0: i32, %arg1: i32) -> (i32, i32, i32) {
    %c0_i32 = arith.constant 0 : i32
    %c0_i32_0 = arith.constant 0 : i32
    return %arg0, %arg1, %c0_i32 : i32, i32, i32
  }
}

</mosaic_0001>

<llo_original>
// kernel: tpu_custom_call.1
$region0: #{tpu_custom_call.1}
  #allocation0 [shape = 'u32[]', space=smem, size = 0x4, offset = 0x4, fixed_abs, tag = 'smem constant byte address 0x4 - core index']
  #allocation1 [shape = 'u32[72,128]{1,0:T(1,128)}', space=vmem, size = 0x9000, scoped, tag = 'internal scratch']
  %s0 = inlined_call_operand.vmem [shape: f32[2,32,16], index: 0, kind: input, shape index: {}]
  %s1 = inlined_call_operand.vmem [shape: f32[1,16], index: 1, kind: input, shape index: {}]
  %s2 = inlined_call_operand.vmem [shape: f32[1,16], index: 2, kind: input, shape index: {}]
  %s3 = inlined_call_operand.vmem [shape: f32[16,32], index: 3, kind: input, shape index: {}]
  %s4 = inlined_call_operand.vmem [shape: f32[1,32], index: 4, kind: input, shape index: {}]
  %s5 = inlined_call_operand.hbm [shape: f32[2,32,32], index: 5, kind: output, shape index: {}]
  %s6 = sld [smem:[#allocation0]]
  $region53: #{tpu_custom_call.1} parent=0
    _
  %s8 = ssub.s32 1, %s6
  %s9 = scalar_select 0, %s8, %s6
  $region1: #{tpu_custom_call.1} parent=0
    #allocation2 [shape = 'u8[32768]{0}', space=vmem, size = 0x8000, scoped, tag = 'output window, operand 0']
    #allocation3 [shape = 's32[2]{0}', space=sflag, size = 0x8, scoped, tag = 'scoped memory for tpu_custom_call.1']
    %10 = vsyncpa [#allocation3], 0
    %s11 = scalar_lea.sflag [#allocation3], 1
    %12 = vsyncpa %s11, 0
    loop: start=0, step=1, limit=4
    $region2: #{tpu_custom_call.1} parent=1 // loop_pre_header
      _
    $region3: #{tpu_custom_call.1} parent=1 // loop_header
      %s14 = sphi 0, %s18
      %p15 = scmp.ge.s32.totalorder %s14, 4
      %s21 = sphi 0, %s33
      %s22 = sphi 0, %s29
      %s23 = sphi 0, %s21
      %s24 = sphi 0, %s22
      %s25 = sphi 0, %s23
      %s26 = sphi 0, %s24
      %s38 = sphi 0, %s40
      %s41 = sphi 0, %s38
      %s42 = sphi 0, %s41
      %s58 = sphi 0, %s42
      %s62 = sphi 0, %s62
      %s64 = sphi 0, %s62
      %s65 = sphi 0, %s64
      %s79 = sphi 0, %s65
      %s83 = sphi 0, %s83
      %s85 = sphi 0, %s83
      %s86 = sphi 0, %s85
      %s100 = sphi 0, %s86
      %s104 = sphi 0, %s104
      %s106 = sphi 0, %s104
      %s107 = sphi 0, %s106
      %s121 = sphi 0, %s107
      %s125 = sphi 0, %s125
      %s127 = sphi 0, %s125
      %s128 = sphi 0, %s127
      %s142 = sphi 0, %s128
      %s150 = sphi 0, %s152
      %s153 = sphi 0, %s150
      %s154 = sphi 0, %s153
      %s170 = sphi 0, %s154
    $region4: #{tpu_custom_call.1} parent=1 // loop_header_branch
      %17 = sbr.rel (%p15) target = $region8
    $region5: #{tpu_custom_call.1} parent=1 // loop_body
      %s19 = ssub.s32 %s14, 1
      %s20 = ssub.s32 %s14, 2
      %s27 = sadd.s32 1, %s22
      %p28 = scmp.ge.s32.totalorder %s27, 1
      %s29 = scalar_select %p28, 0, %s27
      %s30 = sadd.s32 1, %s21
      %s31 = scalar_select %p28, %s30, %s21
      %p32 = scmp.ge.s32.totalorder %s31, 2
      %s33 = scalar_select %p32, 0, %s31
      %s34 = ssub.s32 %s21, %s33
      %s35 = ssub.s32 %s22, %s29
      %s36 = sor.u32 %s34, %s35
      %p37 = scmp.eq.s32.totalorder %s36, 0
      %s39 = sadd.s32 %s38, 1
      %s40 = scalar_select %p37, %s38, %s39
      %p43 = pneg %p37
      %p44 = scmp.eq.s32.totalorder %s14, 1
      %p45 = por %p43, %p44
      %p46 = scmp.ne.s32.totalorder %s38, %s41
      %p47 = scmp.eq.s32.totalorder %s14, 0
      %p48 = por %p46, %p47
      %p49 = scmp.ne.s32.totalorder %s38, %s41
      %p50 = scmp.eq.s32.totalorder %s19, 1
      %p51 = por %p49, %p50
      %p52 = scmp.ne.s32.totalorder %s41, %s42
      %p53 = scmp.eq.s32.totalorder %s19, 0
      %p54 = por %p52, %p53
      %p55 = scmp.ne.s32.totalorder %s41, %s42
      %p56 = scmp.eq.s32.totalorder %s20, 1
      %p57 = por %p55, %p56
      %p59 = scmp.ne.s32.totalorder %s42, %s58
      %p60 = scmp.eq.s32.totalorder %s20, 0
      %p61 = por %p59, %p60
      %s63 = sadd.s32 %s62, 1
      %p66 = scmp.eq.s32.totalorder %s14, 1
      %p67 = scmp.ne.s32.totalorder %s62, %s64
      %p68 = scmp.eq.s32.totalorder %s14, 0
      %p69 = por %p67, %p68
      %p70 = scmp.ne.s32.totalorder %s62, %s64
      %p71 = scmp.eq.s32.totalorder %s19, 1
      %p72 = por %p70, %p71
      %p73 = scmp.ne.s32.totalorder %s64, %s65
      %p74 = scmp.eq.s32.totalorder %s19, 0
      %p75 = por %p73, %p74
      %p76 = scmp.ne.s32.totalorder %s64, %s65
      %p77 = scmp.eq.s32.totalorder %s20, 1
      %p78 = por %p76, %p77
      %p80 = scmp.ne.s32.totalorder %s65, %s79
      %p81 = scmp.eq.s32.totalorder %s20, 0
      %p82 = por %p80, %p81
      %s84 = sadd.s32 %s83, 1
      %p87 = scmp.eq.s32.totalorder %s14, 1
      %p88 = scmp.ne.s32.totalorder %s83, %s85
      %p89 = scmp.eq.s32.totalorder %s14, 0
      %p90 = por %p88, %p89
      %p91 = scmp.ne.s32.totalorder %s83, %s85
      %p92 = scmp.eq.s32.totalorder %s19, 1
      %p93 = por %p91, %p92
      %p94 = scmp.ne.s32.totalorder %s85, %s86
      %p95 = scmp.eq.s32.totalorder %s19, 0
      %p96 = por %p94, %p95
      %p97 = scmp.ne.s32.totalorder %s85, %s86
      %p98 = scmp.eq.s32.totalorder %s20, 1
      %p99 = por %p97, %p98
      %p101 = scmp.ne.s32.totalorder %s86, %s100
      %p102 = scmp.eq.s32.totalorder %s20, 0
      %p103 = por %p101, %p102
      %s105 = sadd.s32 %s104, 1
      %p108 = scmp.eq.s32.totalorder %s14, 1
      %p109 = scmp.ne.s32.totalorder %s104, %s106
      %p110 = scmp.eq.s32.totalorder %s14, 0
      %p111 = por %p109, %p110
      %p112 = scmp.ne.s32.totalorder %s104, %s106
      %p113 = scmp.eq.s32.totalorder %s19, 1
      %p114 = por %p112, %p113
      %p115 = scmp.ne.s32.totalorder %s106, %s107
      %p116 = scmp.eq.s32.totalorder %s19, 0
      %p117 = por %p115, %p116
      %p118 = scmp.ne.s32.totalorder %s106, %s107
      %p119 = scmp.eq.s32.totalorder %s20, 1
      %p120 = por %p118, %p119
      %p122 = scmp.ne.s32.totalorder %s107, %s121
      %p123 = scmp.eq.s32.totalorder %s20, 0
      %p124 = por %p122, %p123
      %s126 = sadd.s32 %s125, 1
      %p129 = scmp.eq.s32.totalorder %s14, 1
      %p130 = scmp.ne.s32.totalorder %s125, %s127
      %p131 = scmp.eq.s32.totalorder %s14, 0
      %p132 = por %p130, %p131
      %p133 = scmp.ne.s32.totalorder %s125, %s127
      %p134 = scmp.eq.s32.totalorder %s19, 1
      %p135 = por %p133, %p134
      %p136 = scmp.ne.s32.totalorder %s127, %s128
      %p137 = scmp.eq.s32.totalorder %s19, 0
      %p138 = por %p136, %p137
      %p139 = scmp.ne.s32.totalorder %s127, %s128
      %p140 = scmp.eq.s32.totalorder %s20, 1
      %p141 = por %p139, %p140
      %p143 = scmp.ne.s32.totalorder %s128, %s142
      %p144 = scmp.eq.s32.totalorder %s20, 0
      %p145 = por %p143, %p144
      %s146 = ssub.s32 %s21, %s33
      %s147 = ssub.s32 %s22, %s29
      %s148 = sor.u32 %s146, %s147
      %p149 = scmp.eq.s32.totalorder %s148, 0
      %s151 = sadd.s32 %s150, 1
      %s152 = scalar_select %p149, %s150, %s151
      %p155 = pneg %p149
      %p156 = scmp.eq.s32.totalorder %s14, 1
      %p157 = por %p155, %p156
      %p158 = scmp.ne.s32.totalorder %s150, %s153
      %p159 = scmp.eq.s32.totalorder %s14, 0
      %p160 = por %p158, %p159
      %p161 = scmp.ne.s32.totalorder %s150, %s153
      %p162 = scmp.eq.s32.totalorder %s19, 1
      %p163 = por %p161, %p162
      %p164 = scmp.ne.s32.totalorder %s153, %s154
      %p165 = scmp.eq.s32.totalorder %s19, 0
      %p166 = por %p164, %p165
      %p167 = scmp.ne.s32.totalorder %s153, %s154
      %p168 = scmp.eq.s32.totalorder %s20, 1
      %p169 = por %p167, %p168
      %p171 = scmp.ne.s32.totalorder %s154, %s170
      %p172 = scmp.eq.s32.totalorder %s20, 0
      %p173 = por %p171, %p172
      %p174 = scmp.le.s32.totalorder 1, %s14
      %p175 = scmp.lt.s32.totalorder %s14, 3
      %p176 = pnand %p174, %p175
      %p177 = pneg %p176
      // Predicated region
      $region9: #{tpu_custom_call.1} parent=5 // pred_check
        _
      $region10: #{tpu_custom_call.1} parent=5 // pred_check_branch
        %179 = sbr.rel (%p176) target = $region12
      $region11: #{tpu_custom_call.1} parent=5 // pred_region
        %s180 = ssub.s32 %s14, 1
        // Predicated region
        $region13: #{tpu_custom_call.1} parent=11 // pred_check
          %p181 = pneg %p75
        $region14: #{tpu_custom_call.1} parent=11 // pred_check_branch
          %183 = sbr.rel (%p181) target = $region16
        $region15: #{tpu_custom_call.1} parent=11 // pred_region
          _
        $region16: #{tpu_custom_call.1} parent=11 // pred_fallthru
          _
        // Predicated region
        $region17: #{tpu_custom_call.1} parent=11 // pred_check
          %p184 = pneg %p96
        $region18: #{tpu_custom_call.1} parent=11 // pred_check_branch
          %186 = sbr.rel (%p184) target = $region20
        $region19: #{tpu_custom_call.1} parent=11 // pred_region
          _
        $region20: #{tpu_custom_call.1} parent=11 // pred_fallthru
          _
        // Predicated region
        $region21: #{tpu_custom_call.1} parent=11 // pred_check
          %p187 = pneg %p117
        $region22: #{tpu_custom_call.1} parent=11 // pred_check_branch
          %189 = sbr.rel (%p187) target = $region24
        $region23: #{tpu_custom_call.1} parent=11 // pred_region
          _
        $region24: #{tpu_custom_call.1} parent=11 // pred_fallthru
          _
        // Predicated region
        $region25: #{tpu_custom_call.1} parent=11 // pred_check
          %p190 = pneg %p138
        $region26: #{tpu_custom_call.1} parent=11 // pred_check_branch
          %192 = sbr.rel (%p190) target = $region28
        $region27: #{tpu_custom_call.1} parent=11 // pred_region
          _
        $region28: #{tpu_custom_call.1} parent=11 // pred_fallthru
          _
      $region12: #{tpu_custom_call.1} parent=5 // pred_fallthru
        _
      %p193 = scmp.lt.s32.totalorder %s14, 2
      // Predicated region
      $region29: #{tpu_custom_call.1} parent=5 // pred_check
        %p194 = pneg %p193
      $region30: #{tpu_custom_call.1} parent=5 // pred_check_branch
        %196 = sbr.rel (%p194) target = $region32
      $region31: #{tpu_custom_call.1} parent=5 // pred_region
        // Predicated region
        $region33: #{tpu_custom_call.1} parent=31 // pred_check
          %p197 = pneg %p48
        $region34: #{tpu_custom_call.1} parent=31 // pred_check_branch
          %199 = sbr.rel (%p197) target = $region36
        $region35: #{tpu_custom_call.1} parent=31 // pred_region
          %s200 = smul.u32 4, %s22
          %p201 = scmp.lt.s32.totalorder %s21, 1
          %s202 = scalar_select %p201, %s21, 1
          %p203 = scmp.lt.s32.totalorder %s200, 3
          %s204 = scalar_select %p203, %s200, 3
          %s205 = smul.addr %s202, 4
          %s206 = sadd.s32 %s204, %s205
          %s207 = smul.addr %s206, 8
          %s208 = scalar_lea.vmem %s0, %s207
          %s209 = smul.u32 4, %s22
        $region36: #{tpu_custom_call.1} parent=31 // pred_fallthru
          _
      $region32: #{tpu_custom_call.1} parent=5 // pred_fallthru
        _
      %p210 = scmp.le.s32.totalorder 1, %s14
      %p211 = scmp.lt.s32.totalorder %s14, 3
      %p212 = pnand %p210, %p211
      %p213 = pneg %p212
      // Predicated region
      $region37: #{tpu_custom_call.1} parent=5 // pred_check
        _
      $region38: #{tpu_custom_call.1} parent=5 // pred_check_branch
        %215 = sbr.rel (%p212) target = $region40
      $region39: #{tpu_custom_call.1} parent=5 // pred_region
        %s216 = ssub.s32 %s14, 1
        %s217 = smul.u32 4, %s24
        %p218 = scmp.lt.s32.totalorder %s23, 1
        %s219 = scalar_select %p218, %s23, 1
        %p220 = scmp.lt.s32.totalorder %s217, 3
        %s221 = scalar_select %p220, %s217, 3
        %s222 = smul.addr %s219, 4
        %s223 = sadd.s32 %s221, %s222
        %s224 = smul.addr %s223, 8
        %s225 = scalar_lea.vmem %s0, %s224
        %p226 = pneg %p54
        %p227 = pneg %p51
        %p228 = pneg %p75
        %p229 = pneg %p72
        %p230 = pneg %p96
        %p231 = pneg %p93
        %p232 = pneg %p117
        %p233 = pneg %p114
        %p234 = pneg %p138
        %p235 = pneg %p135
        %p236 = pneg %p166
        %p237 = pneg %p163
        %s238 = sand.u32 %s153, 1
        %s239 = scalar_lea.sflag [#allocation3], %s238
        %s240 = sand.u32 %s153, 1
        %s241 = smul.addr %s240, 32
        %s242 = scalar_lea.vmem [#allocation2], %s241
        %s243 = smul.u32 4, %s24
        %p244 = scmp.lt.s32.totalorder %s23, 1
        %s245 = scalar_select %p244, %s23, 1
        %p246 = scmp.lt.s32.totalorder %s243, 3
        %s247 = scalar_select %p246, %s243, 3
        %s248 = smul.addr %s245, 4
        %s249 = sadd.s32 %s247, %s248
        %s250 = smul.addr %s249, 8
        %s251 = scalar_lea.vmem %s0, %s250
        %s252 = smul.u32 4, %s24
        %s253 = smul.u32 4, %s24
        %v254 = vld [vmem:[%s251] sm:$0xff]
        %v255 = vld [vmem:[%s251 + $0x8] sm:$0xff]
        %v256 = vld [vmem:[%s251 + $0x10] sm:$0xff]
        %v257 = vld [vmem:[%s251 + $0x18] sm:$0xff]
        %v258 = vld [vmem:[%s1] sm:$0x1]
        %v259 = vld [vmem:[%s2] sm:$0x1]
        %vm260 = vcmask 130048
        %v261 = vsel %vm260, %v254, 0.0
        %262 = vadd.xlane.f32.xlu0 %v261
        %v263 = vpop.xlane.xlu0 %262
        %v264 = vsel %vm260, %v255, 0.0
        %265 = vadd.xlane.f32.xlu0 %v264
        %v266 = vpop.xlane.xlu0 %265
        %v267 = vsel %vm260, %v256, 0.0
        %268 = vadd.xlane.f32.xlu0 %v267
        %v269 = vpop.xlane.xlu0 %268
        %v270 = vsel %vm260, %v257, 0.0
        %271 = vadd.xlane.f32.xlu0 %v270
        %v272 = vpop.xlane.xlu0 %271
        %v273 = vrcp.pop 16.0
        %v274 = vmul.f32 16.0, %v273
        %v275 = vsub.f32 1.0, %v274
        %v276 = vmul.f32 %v273, %v275
        %v277 = vadd.f32 %v273, %v276
        %vm278 = vweird.f32 %v273
        %v279 = vsel %vm278, %v273, %v277
        %v280 = vmul.f32 %v263, %v279
        %v281 = vmul.f32 %v266, %v279
        %v282 = vmul.f32 %v269, %v279
        %v283 = vmul.f32 %v272, %v279
        %v284 = vmul.f32 %v254, %v254
        %v285 = vmul.f32 %v255, %v255
        %v286 = vmul.f32 %v256, %v256
        %v287 = vmul.f32 %v257, %v257
        %v288 = vsel %vm260, %v284, 0.0
        %289 = vadd.xlane.f32.xlu0 %v288
        %v290 = vpop.xlane.xlu0 %289
        %v291 = vsel %vm260, %v285, 0.0
        %292 = vadd.xlane.f32.xlu0 %v291
        %v293 = vpop.xlane.xlu0 %292
        %v294 = vsel %vm260, %v286, 0.0
        %295 = vadd.xlane.f32.xlu0 %v294
        %v296 = vpop.xlane.xlu0 %295
        %v297 = vsel %vm260, %v287, 0.0
        %298 = vadd.xlane.f32.xlu0 %v297
        %v299 = vpop.xlane.xlu0 %298
        %v300 = vmul.f32 %v290, %v279
        %v301 = vmul.f32 %v293, %v279
        %v302 = vmul.f32 %v296, %v279
        %v303 = vmul.f32 %v299, %v279
        %v304 = vmul.f32 %v280, %v280
        %v305 = vmul.f32 %v281, %v281
        %v306 = vmul.f32 %v282, %v282
        %v307 = vmul.f32 %v283, %v283
        %v308 = vsub.f32 %v300, %v304
        %v309 = vsub.f32 %v301, %v305
        %v310 = vsub.f32 %v302, %v306
        %v311 = vsub.f32 %v303, %v307
        %v312 = vmax.f32 %v308, 0.0
        %v313 = vmax.f32 %v309, 0.0
        %v314 = vmax.f32 %v310, 0.0
        %v315 = vmax.f32 %v311, 0.0
        %v316 = vsub.f32 %v254, %v280
        %v317 = vsub.f32 %v255, %v281
        %v318 = vsub.f32 %v256, %v282
        %v319 = vsub.f32 %v257, %v283
        %v320 = vadd.f32 %v312, 1e-05
        %v321 = vadd.f32 %v313, 1e-05
        %v322 = vadd.f32 %v314, 1e-05
        %v323 = vadd.f32 %v315, 1e-05
        %v324 = vrsqrt.pop %v320
        %v325 = vmul.f32 %v324, %v320
        %v326 = vmul.f32 %v325, %v324
        %v327 = vmul.f32 0.5, %v326
        %v328 = vsub.f32 1.5, %v327
        %v329 = vmul.f32 %v324, %v328
        %vm330 = vweird.f32 %v320
        %vm331 = vweird.f32 %v324
        %vm332 = vmor %vm330, %vm331
        %v333 = vsel %vm332, %v324, %v329
        %v334 = vrsqrt.pop %v321
        %v335 = vmul.f32 %v334, %v321
        %v336 = vmul.f32 %v335, %v334
        %v337 = vmul.f32 0.5, %v336
        %v338 = vsub.f32 1.5, %v337
        %v339 = vmul.f32 %v334, %v338
        %vm340 = vweird.f32 %v321
        %vm341 = vweird.f32 %v334
        %vm342 = vmor %vm340, %vm341
        %v343 = vsel %vm342, %v334, %v339
        %v344 = vrsqrt.pop %v322
        %v345 = vmul.f32 %v344, %v322
        %v346 = vmul.f32 %v345, %v344
        %v347 = vmul.f32 0.5, %v346
        %v348 = vsub.f32 1.5, %v347
        %v349 = vmul.f32 %v344, %v348
        %vm350 = vweird.f32 %v322
        %vm351 = vweird.f32 %v344
        %vm352 = vmor %vm350, %vm351
        %v353 = vsel %vm352, %v344, %v349
        %v354 = vrsqrt.pop %v323
        %v355 = vmul.f32 %v354, %v323
        %v356 = vmul.f32 %v355, %v354
        %v357 = vmul.f32 0.5, %v356
        %v358 = vsub.f32 1.5, %v357
        %v359 = vmul.f32 %v354, %v358
        %vm360 = vweird.f32 %v323
        %vm361 = vweird.f32 %v354
        %vm362 = vmor %vm360, %vm361
        %v363 = vsel %vm362, %v354, %v359
        %v364 = vmul.f32 %v316, %v333
        %v365 = vmul.f32 %v317, %v343
        %v366 = vmul.f32 %v318, %v353
        %v367 = vmul.f32 %v319, %v363
        %v369 = vperm.slane %v258, 0
        %v371 = vmul.f32 %v364, %v369
        %v372 = vmul.f32 %v365, %v369
        %v373 = vmul.f32 %v366, %v369
        %v374 = vmul.f32 %v367, %v369
        %v376 = vperm.slane %v259, 0
        %v378 = vadd.f32 %v371, %v376
        %v379 = vadd.f32 %v372, %v376
        %v380 = vadd.f32 %v373, %v376
        %v381 = vadd.f32 %v374, %v376
        %v382 = vld [vmem:[%s3] sm:$0xff]
        %v383 = vld [vmem:[%s3 + $0x8] sm:$0xff]
        %v384 = vld [vmem:[%s4] sm:$0x1]
        %v386 = vperm.slane %v384, 0
        %v389 = vsel %vm260, %v378, 0
        %v392 = vsel %vm260, %v379, 0
        %v395 = vsel %vm260, %v380, 0
        %v398 = vsel %vm260, %v381, 0
        %400 = vmatpush.msra.mxu0 0.0
        %401 = vmatpush.msra.mxu0 0.0
        %402 = vmatpush.msra.mxu0 0.0
        %403 = vmatpush.msra.mxu0 0.0
        %404 = vmatpush.msra.mxu0 0.0
        %405 = vmatpush.msra.mxu0 0.0
        %406 = vmatpush.msra.mxu0 0.0
        %407 = vmatpush.msra.mxu0 0.0
        %408 = vmatpush.msra.mxu0 0.0
        %409 = vmatpush.msra.mxu0 0.0
        %410 = vmatpush.msra.mxu0 0.0
        %411 = vmatpush.msra.mxu0 0.0
        %412 = vmatpush.msra.mxu0 0.0
        %413 = vmatpush.msra.mxu0 0.0
        %414 = vmatpush.msra.mxu0 %v383
        %415 = vmatpush.msra.mxu0 %v382
        %416 = vmatmul.f32.gmra.mxu0 %v389
        %v417 = vpop.f32.mrf.mxu0
        %v418 = vadd.f32 %v386, %v417
        %419 = vmatmul.f32.gmra.mxu0 %v392
        %v420 = vpop.f32.mrf.mxu0
        %v421 = vadd.f32 %v386, %v420
        %422 = vmatmul.f32.gmra.mxu0 %v395
        %v423 = vpop.f32.mrf.mxu0
        %v424 = vadd.f32 %v386, %v423
        %425 = vmatmul.f32.gmra.mxu0 %v398
        %v426 = vpop.f32.mrf.mxu0
        %v427 = vadd.f32 %v386, %v426
        %428 = vdwg.mxu0
        %vm429 = vcmask 261120
        %430 = vst.msk [vmem:[%s242] sm:$0xff] %vm429, %v418
        %431 = vst.msk [vmem:[%s242 + $0x8] sm:$0xff] %vm429, %v421
        %432 = vst.msk [vmem:[%s242 + $0x10] sm:$0xff] %vm429, %v424
        %433 = vst.msk [vmem:[%s242 + $0x18] sm:$0xff] %vm429, %v427
        %s434 = sand.u32 %s153, 1
        %s435 = scalar_lea.sflag [#allocation3], %s434
        %s436 = sand.u32 %s153, 1
        %s437 = smul.addr %s436, 32
        %s438 = scalar_lea.vmem [#allocation2], %s437
        // Predicated region
        $region41: #{tpu_custom_call.1} parent=39 // pred_check
          %p439 = pneg %p163
        $region42: #{tpu_custom_call.1} parent=39 // pred_check_branch
          %441 = sbr.rel (%p439) target = $region44
        $region43: #{tpu_custom_call.1} parent=39 // pred_region
          %s442 = smul.u32 4, %s24
          %444 = vsyncadd %s435, 0
          %s445 = smul.addr %s23, 4
          %s446 = sadd.s32 %s442, %s445
          %s447 = smul.addr %s446, 8
          %s448 = scalar_lea.hbm %s5, %s447
          %s449 = sshll.u32 %s438, 4
          %s450 = int_to_ptr.vmem [resolvable:$true] %s449
          %s451 = sshll.u32 %s448, 4
          %s452 = int_to_ptr.hbm [resolvable:$true] %s451
          %457 = dma.vmem_to_hbm [thread:$0]  %s450, 512, %s452, %s435, 128, 128, 8
        $region44: #{tpu_custom_call.1} parent=39 // pred_fallthru
          _
      $region40: #{tpu_custom_call.1} parent=5 // pred_fallthru
        _
      %p458 = scmp.le.s32.totalorder 2, %s14
      // Predicated region
      $region45: #{tpu_custom_call.1} parent=5 // pred_check
        %p459 = pneg %p458
      $region46: #{tpu_custom_call.1} parent=5 // pred_check_branch
        %461 = sbr.rel (%p459) target = $region48
      $region47: #{tpu_custom_call.1} parent=5 // pred_region
        %s462 = ssub.s32 %s14, 2
        // Predicated region
        $region49: #{tpu_custom_call.1} parent=47 // pred_check
          %p463 = pneg %p169
        $region50: #{tpu_custom_call.1} parent=47 // pred_check_branch
          %465 = sbr.rel (%p463) target = $region52
        $region51: #{tpu_custom_call.1} parent=47 // pred_region
          %s466 = sand.u32 %s154, 1
          %s467 = scalar_lea.sflag [#allocation3], %s466
          %s468 = sand.u32 %s154, 1
          %s469 = smul.addr %s468, 32
          %s470 = scalar_lea.vmem [#allocation2], %s469
          %472 = dma.done %s467, 512
        $region52: #{tpu_custom_call.1} parent=47 // pred_fallthru
          _
      $region48: #{tpu_custom_call.1} parent=5 // pred_fallthru
        _
    $region6: #{tpu_custom_call.1} parent=1 // loop_footer
      %s18 = sadd.s32 1, %s14
    $region7: #{tpu_custom_call.1} parent=1 // loop_footer_branch
      %13 = sbr.rel target = $region3
    $region8: #{tpu_custom_call.1} parent=1 // loop_exit
      _
    %473 = vsyncpa [#allocation3], 1
    %s474 = scalar_lea.sflag [#allocation3], 1
    %475 = vsyncpa %s474, 1

</llo_original>
